<compile_context>
chip_gen: v7x
topology: tpu7x:2x2x1
jax: 0.10.0
libtpu: 0.0.40
codegen_flags: <defaults>
</compile_context>

<pallas_src>
import math

import jax
import jax.numpy as jnp
from jax import lax
from jax.experimental import pallas as pl
from jax.experimental.pallas import tpu as pltpu


def _round_up(a: int, m: int) -> int:
    return ((a + m - 1) // m) * m


# Conservative per-call VMEM budget for all blocks incl. double-buffering.
# v5e scoped default is 16 MiB; v6e 32 MiB; v7x 32 MiB scoped / 64 MiB phys.
_VMEM_BUDGET = 12 * 1024 * 1024
_F32 = 4


# --------------------------------------------------------------------------
# Kernel bodies
# --------------------------------------------------------------------------


def _compute_w_into(st, filt_ref, w_ref):
    """w[k, :] = st[k, :] @ filt[k]  -> written into w_ref ([K, d2p]).

    K tiny [1, d1] x [d1, d2p] MXU matmuls (K*d1*d2p MACs total) plus K
    single-row stores; runs once per launch, negligible cost.
    """
    k_dim = filt_ref.shape[0]
    for k in range(k_dim):  # static unroll; K is small
        w_ref[k:k + 1, :] = jnp.dot(
            st[k:k + 1, :], filt_ref[k], preferred_element_type=jnp.float32)


def _fused_kernel(vk_ref, x_ref, filt_ref, y_ref, w_scr):
    """Whole problem in one call (N fits one tile under the VMEM budget)."""
    vk = vk_ref[...]                                     # [Np, K]
    # st = v_k.T @ x, contracting over N without materializing the transpose.
    st = lax.dot_general(
        vk, x_ref[...],
        dimension_numbers=(((0,), (0,)), ((), ())),
        preferred_element_type=jnp.float32)              # [K, d1]
    _compute_w_into(st, filt_ref, w_scr)                 # [K, d2p]
    y_ref[...] = jnp.dot(
        vk, w_scr[...], preferred_element_type=jnp.float32).astype(y_ref.dtype)


def _st_w_kernel(vk_ref, x_ref, filt_ref, w_ref, st_acc):
    """Phase 1 (tiled path): accumulate st = v_k.T @ x over N tiles; on the
    last tile fold in w[k,:] = st[k,:] @ filt[k] so phase 2 never sees filt."""
    i = pl.program_id(0)

    @pl.when(i == 0)
    def _():
        st_acc[...] = jnp.zeros_like(st_acc)

    st_acc[...] += lax.dot_general(
        vk_ref[...], x_ref[...],
        dimension_numbers=(((0,), (0,)), ((), ())),
        preferred_element_type=jnp.float32)

    @pl.when(i == pl.num_programs(0) - 1)
    def _():
        _compute_w_into(st_acc[...], filt_ref, w_ref)


def _apply_kernel(vk_ref, w_ref, y_ref):
    """Phase 2 (tiled path): stream y = v_k @ w over N tiles (HBM-bound)."""
    y_ref[...] = jnp.dot(
        vk_ref[...], w_ref[...],
        preferred_element_type=jnp.float32).astype(y_ref.dtype)


# --------------------------------------------------------------------------
# Wrapper
# --------------------------------------------------------------------------


def spec_conv(x, v_k, filt, *, block_n: int = 1024):
    N, d1 = x.shape
    Nv, K = v_k.shape
    Kf, d1f, d2 = filt.shape
    assert Nv == N and Kf == K and d1f == d1

    # Lane-dense output: pad d2 to a multiple of 128 with zero filter columns.
    d2p = _round_up(d2, 128)
    if d2p != d2:
        filt = jnp.pad(filt, ((0, 0), (0, 0), (0, d2p - d2)))
    filt_bytes = K * d1 * d2p * _F32

    # ---- Single fully-fused call if everything fits the VMEM budget --------
    Np1 = _round_up(max(N, 8), 8)
    fused_bytes = (2 * _F32 * (Np1 * K + Np1 * d1 + Np1 * d2p)   # dbl-buffered blocks
                   + 2 * filt_bytes                              # filt block
                   + K * d2p * _F32)                             # w scratch
    if N <= block_n and fused_bytes <= _VMEM_BUDGET:
        if Np1 != N:
            pad = Np1 - N
            x = jnp.pad(x, ((0, pad), (0, 0)))
            v_k = jnp.pad(v_k, ((0, pad), (0, 0)))
        y_pad = pl.pallas_call(
            _fused_kernel,
            out_shape=jax.ShapeDtypeStruct((Np1, d2p), jnp.float32),
            grid=(1,),
            in_specs=[
                pl.BlockSpec((Np1, K), lambda i: (0, 0)),
                pl.BlockSpec((Np1, d1), lambda i: (0, 0)),
                pl.BlockSpec((K, d1, d2p), lambda i: (0, 0, 0)),
            ],
            out_specs=pl.BlockSpec((Np1, d2p), lambda i: (0, 0)),
            scratch_shapes=[pltpu.VMEM((K, d2p), jnp.float32)],
        )(v_k, x, filt)
        return y_pad[:N, :d2]

    # ---- Tiled two-phase path ----------------------------------------------
    # VMEM accounting (double-buffered blocks) to pick the largest N tile.
    fixed1 = 2 * filt_bytes + K * d1 * _F32 + 2 * K * d2p * _F32
    per_row1 = 2 * _F32 * (K + d1)
    fixed2 = 2 * K * d2p * _F32
    per_row2 = 2 * _F32 * (K + d2p)
    if (fixed1 + 8 * per_row1 > _VMEM_BUDGET
            or fixed2 + 8 * per_row2 > _VMEM_BUDGET):
        # TODO(synk): tile d2 over a second grid axis for filters too large to
        # keep [K, d1, d2p] resident in VMEM; not needed for these shapes.
        raise ValueError("SpecConv filter too large for VMEM-resident blocks")
    tn_max = min((_VMEM_BUDGET - fixed1) // per_row1,
                 (_VMEM_BUDGET - fixed2) // per_row2)
    tn = min(block_n, tn_max, _round_up(N, 8))
    tn = max(8, (tn // 8) * 8)

    Np = _round_up(N, tn)
    if Np != N:
        pad = Np - N
        x = jnp.pad(x, ((0, pad), (0, 0)))
        v_k = jnp.pad(v_k, ((0, pad), (0, 0)))
    num_tiles = Np // tn

    # Phase 1: st accumulated over N tiles (reduction axis, output-resident
    # accumulator); w computed on the final tile.
    w = pl.pallas_call(
        _st_w_kernel,
        out_shape=jax.ShapeDtypeStruct((K, d2p), jnp.float32),
        grid=(num_tiles,),
        in_specs=[
            pl.BlockSpec((tn, K), lambda i: (i, 0)),
            pl.BlockSpec((tn, d1), lambda i: (i, 0)),
            pl.BlockSpec((K, d1, d2p), lambda i: (0, 0, 0)),
        ],
        out_specs=pl.BlockSpec((K, d2p), lambda i: (0, 0)),
        scratch_shapes=[pltpu.VMEM((K, d1), jnp.float32)],
        compiler_params=pltpu.CompilerParams(
            dimension_semantics=("arbitrary",)),
    )(v_k, x, filt)

    # Phase 2: stream y = v_k @ w over N tiles (independent -> parallel).
    y_pad = pl.pallas_call(
        _apply_kernel,
        out_shape=jax.ShapeDtypeStruct((Np, d2p), jnp.float32),
        grid=(num_tiles,),
        in_specs=[
            pl.BlockSpec((tn, K), lambda i: (i, 0)),
            pl.BlockSpec((K, d2p), lambda i: (0, 0)),
        ],
        out_specs=pl.BlockSpec((tn, d2p), lambda i: (i, 0)),
        compiler_params=pltpu.CompilerParams(
            dimension_semantics=("parallel",)),
    )(v_k, w)

    return y_pad[:N, :d2]


# --------------------------------------------------------------------------
# Reference + init (matches nn.init.xavier_normal_ on a [K, d1, d2] tensor)
# --------------------------------------------------------------------------


def init_filter(key, K, dim1, dim2):
    # fan_in = size(1) * rf, fan_out = size(0) * rf, rf = prod(dims[2:]) = dim2
    fan_in = dim1 * dim2
    fan_out = K * dim2
    std = math.sqrt(2.0 / (fan_in + fan_out))
    return std * jax.random.normal(key, (K, dim1, dim2), dtype=jnp.float32)


def spec_conv_ref(x, v_k, filt):
    hp = lax.Precision.HIGHEST
    st = jnp.dot(v_k.T, x, precision=hp)                 # [K, d1]
    w = jnp.sum(filt * st[:, :, None], axis=1)           # [K, d2]
    return jnp.dot(v_k, w, precision=hp)                 # [N, d2]


if __name__ == "__main__":
    root = jax.random.PRNGKey(0)

    def run_case(key, N, d1, d2, K, block_n):
        kx, kv, kf = jax.random.split(key, 3)
        x = jax.random.normal(kx, (N, d1), dtype=jnp.float32)
        v_k = jax.random.normal(kv, (N, K), dtype=jnp.float32)
        filt = init_filter(kf, K, d1, d2)

        y = jax.block_until_ready(spec_conv(x, v_k, filt, block_n=block_n))
        y_ref = spec_conv_ref(x, v_k, filt)

        assert y.shape == (N, d2)
        assert jnp.allclose(y, y_ref, atol=1e-3, rtol=1e-3), (
            f"mismatch vs reference for N={N}, d1={d1}, d2={d2}, K={K}")

    k_small, k_big = jax.random.split(root)

    # Small shape from the original module example -> single fused call path.
    run_case(k_small, N=16, d1=32, d2=32, K=8, block_n=1024)

    # Larger non-multiple N -> tiled two-phase path (st reduction + fused w
    # epilogue, then the parallel streaming y = v_k @ w), with >=512-row tiles.
    run_case(k_big, N=1500, d1=128, d2=64, K=16, block_n=512)

    print("KERNEL_OK")
</pallas_src>

<mosaic_0001>
module attributes {stable_mosaic.version = 11 : i64} {
  func.func @_fused_kernel(%arg0: i32, %arg1: memref<16x8xf32, #tpu.memory_space<vmem>>, %arg2: memref<16x32xf32, #tpu.memory_space<vmem>>, %arg3: memref<8x32x128xf32, #tpu.memory_space<vmem>>, %arg4: memref<16x128xf32, #tpu.memory_space<vmem>>, %arg5: memref<8x128xf32, #tpu.memory_space<vmem>>) attributes {dimension_semantics = [#tpu.dimension_semantics<arbitrary>], iteration_bounds = array<i64: 1>, scalar_prefetch = 0 : i64, scratch_operands = 1 : i64, tpu.core_type = #tpu.core_type<tc>, window_params = [{pipeline_mode = #tpu.pipeline_mode<synchronous>, transform_indices = @transform_0, window_bounds = array<i64: 16, 8>}, {pipeline_mode = #tpu.pipeline_mode<synchronous>, transform_indices = @transform_1, window_bounds = array<i64: 16, 32>}, {pipeline_mode = #tpu.pipeline_mode<synchronous>, transform_indices = @transform_2, window_bounds = array<i64: 8, 32, 128>}, {pipeline_mode = #tpu.pipeline_mode<synchronous>, transform_indices = @transform_3, window_bounds = array<i64: 16, 128>}]} {
    %c0 = arith.constant 0 : index
    %c0_0 = arith.constant 0 : index
    %0 = vector.load %arg1[%c0, %c0_0] : memref<16x8xf32, #tpu.memory_space<vmem>>, vector<16x8xf32>
    %c0_1 = arith.constant 0 : index
    %c0_2 = arith.constant 0 : index
    %1 = vector.load %arg2[%c0_1, %c0_2] : memref<16x32xf32, #tpu.memory_space<vmem>>, vector<16x32xf32>
    %cst = arith.constant dense<0.000000e+00> : vector<8x32xf32>
    %2 = tpu.matmul %0, %1, %cst {dimension_numbers = #tpu.dot_dimension_numbers<[0], [0], [1], [1], [0, 1, 1, 1], [], []>} : vector<16x8xf32>, vector<16x32xf32>, vector<8x32xf32> -> vector<8x32xf32>
    %3 = vector.extract_strided_slice %2 {offsets = [0, 0], sizes = [1, 32], strides = [1, 1]} : vector<8x32xf32> to vector<1x32xf32>
    %c0_3 = arith.constant 0 : index
    %c0_4 = arith.constant 0 : index
    %c0_5 = arith.constant 0 : index
    %4 = vector.load %arg3[%c0_3, %c0_4, %c0_5] : memref<8x32x128xf32, #tpu.memory_space<vmem>>, vector<1x32x128xf32>
    %5 = vector.shape_cast %4 : vector<1x32x128xf32> to vector<32x128xf32>
    %cst_6 = arith.constant dense<0.000000e+00> : vector<1x128xf32>
    %6 = tpu.matmul %3, %5, %cst_6 {dimension_numbers = #tpu.dot_dimension_numbers<[1], [0], [0], [1], [0, 0, 1, 1], [], []>} : vector<1x32xf32>, vector<32x128xf32>, vector<1x128xf32> -> vector<1x128xf32>
    %c0_7 = arith.constant 0 : index
    %c0_8 = arith.constant 0 : index
    %7 = vector.load %arg5[%c0_7, %c0_8] : memref<8x128xf32, #tpu.memory_space<vmem>>, vector<1x128xf32>
    tpu.vector_store %arg5[%c0_7, %c0_8], %6 {strides = array<i32>} : memref<8x128xf32, #tpu.memory_space<vmem>>, vector<1x128xf32>,
    %8 = vector.extract_strided_slice %2 {offsets = [1, 0], sizes = [1, 32], strides = [1, 1]} : vector<8x32xf32> to vector<1x32xf32>
    %c1 = arith.constant 1 : index
    %c0_9 = arith.constant 0 : index
    %c0_10 = arith.constant 0 : index
    %9 = vector.load %arg3[%c1, %c0_9, %c0_10] : memref<8x32x128xf32, #tpu.memory_space<vmem>>, vector<1x32x128xf32>
    %10 = vector.shape_cast %9 : vector<1x32x128xf32> to vector<32x128xf32>
    %cst_11 = arith.constant dense<0.000000e+00> : vector<1x128xf32>
    %11 = tpu.matmul %8, %10, %cst_11 {dimension_numbers = #tpu.dot_dimension_numbers<[1], [0], [0], [1], [0, 0, 1, 1], [], []>} : vector<1x32xf32>, vector<32x128xf32>, vector<1x128xf32> -> vector<1x128xf32>
    %c1_12 = arith.constant 1 : index
    %c0_13 = arith.constant 0 : index
    %12 = vector.load %arg5[%c1_12, %c0_13] : memref<8x128xf32, #tpu.memory_space<vmem>>, vector<1x128xf32>
    tpu.vector_store %arg5[%c1_12, %c0_13], %11 {strides = array<i32>} : memref<8x128xf32, #tpu.memory_space<vmem>>, vector<1x128xf32>,
    %13 = vector.extract_strided_slice %2 {offsets = [2, 0], sizes = [1, 32], strides = [1, 1]} : vector<8x32xf32> to vector<1x32xf32>
    %c2 = arith.constant 2 : index
    %c0_14 = arith.constant 0 : index
    %c0_15 = arith.constant 0 : index
    %14 = vector.load %arg3[%c2, %c0_14, %c0_15] : memref<8x32x128xf32, #tpu.memory_space<vmem>>, vector<1x32x128xf32>
    %15 = vector.shape_cast %14 : vector<1x32x128xf32> to vector<32x128xf32>
    %cst_16 = arith.constant dense<0.000000e+00> : vector<1x128xf32>
    %16 = tpu.matmul %13, %15, %cst_16 {dimension_numbers = #tpu.dot_dimension_numbers<[1], [0], [0], [1], [0, 0, 1, 1], [], []>} : vector<1x32xf32>, vector<32x128xf32>, vector<1x128xf32> -> vector<1x128xf32>
    %c2_17 = arith.constant 2 : index
    %c0_18 = arith.constant 0 : index
    %17 = vector.load %arg5[%c2_17, %c0_18] : memref<8x128xf32, #tpu.memory_space<vmem>>, vector<1x128xf32>
    tpu.vector_store %arg5[%c2_17, %c0_18], %16 {strides = array<i32>} : memref<8x128xf32, #tpu.memory_space<vmem>>, vector<1x128xf32>,
    %18 = vector.extract_strided_slice %2 {offsets = [3, 0], sizes = [1, 32], strides = [1, 1]} : vector<8x32xf32> to vector<1x32xf32>
    %c3 = arith.constant 3 : index
    %c0_19 = arith.constant 0 : index
    %c0_20 = arith.constant 0 : index
    %19 = vector.load %arg3[%c3, %c0_19, %c0_20] : memref<8x32x128xf32, #tpu.memory_space<vmem>>, vector<1x32x128xf32>
    %20 = vector.shape_cast %19 : vector<1x32x128xf32> to vector<32x128xf32>
    %cst_21 = arith.constant dense<0.000000e+00> : vector<1x128xf32>
    %21 = tpu.matmul %18, %20, %cst_21 {dimension_numbers = #tpu.dot_dimension_numbers<[1], [0], [0], [1], [0, 0, 1, 1], [], []>} : vector<1x32xf32>, vector<32x128xf32>, vector<1x128xf32> -> vector<1x128xf32>
    %c3_22 = arith.constant 3 : index
    %c0_23 = arith.constant 0 : index
    %22 = vector.load %arg5[%c3_22, %c0_23] : memref<8x128xf32, #tpu.memory_space<vmem>>, vector<1x128xf32>
    tpu.vector_store %arg5[%c3_22, %c0_23], %21 {strides = array<i32>} : memref<8x128xf32, #tpu.memory_space<vmem>>, vector<1x128xf32>,
    %23 = vector.extract_strided_slice %2 {offsets = [4, 0], sizes = [1, 32], strides = [1, 1]} : vector<8x32xf32> to vector<1x32xf32>
    %c4 = arith.constant 4 : index
    %c0_24 = arith.constant 0 : index
    %c0_25 = arith.constant 0 : index
    %24 = vector.load %arg3[%c4, %c0_24, %c0_25] : memref<8x32x128xf32, #tpu.memory_space<vmem>>, vector<1x32x128xf32>
    %25 = vector.shape_cast %24 : vector<1x32x128xf32> to vector<32x128xf32>
    %cst_26 = arith.constant dense<0.000000e+00> : vector<1x128xf32>
    %26 = tpu.matmul %23, %25, %cst_26 {dimension_numbers = #tpu.dot_dimension_numbers<[1], [0], [0], [1], [0, 0, 1, 1], [], []>} : vector<1x32xf32>, vector<32x128xf32>, vector<1x128xf32> -> vector<1x128xf32>
    %c4_27 = arith.constant 4 : index
    %c0_28 = arith.constant 0 : index
    %27 = vector.load %arg5[%c4_27, %c0_28] : memref<8x128xf32, #tpu.memory_space<vmem>>, vector<1x128xf32>
    tpu.vector_store %arg5[%c4_27, %c0_28], %26 {strides = array<i32>} : memref<8x128xf32, #tpu.memory_space<vmem>>, vector<1x128xf32>,
    %28 = vector.extract_strided_slice %2 {offsets = [5, 0], sizes = [1, 32], strides = [1, 1]} : vector<8x32xf32> to vector<1x32xf32>
    %c5 = arith.constant 5 : index
    %c0_29 = arith.constant 0 : index
    %c0_30 = arith.constant 0 : index
    %29 = vector.load %arg3[%c5, %c0_29, %c0_30] : memref<8x32x128xf32, #tpu.memory_space<vmem>>, vector<1x32x128xf32>
    %30 = vector.shape_cast %29 : vector<1x32x128xf32> to vector<32x128xf32>
    %cst_31 = arith.constant dense<0.000000e+00> : vector<1x128xf32>
    %31 = tpu.matmul %28, %30, %cst_31 {dimension_numbers = #tpu.dot_dimension_numbers<[1], [0], [0], [1], [0, 0, 1, 1], [], []>} : vector<1x32xf32>, vector<32x128xf32>, vector<1x128xf32> -> vector<1x128xf32>
    %c5_32 = arith.constant 5 : index
    %c0_33 = arith.constant 0 : index
    %32 = vector.load %arg5[%c5_32, %c0_33] : memref<8x128xf32, #tpu.memory_space<vmem>>, vector<1x128xf32>
    tpu.vector_store %arg5[%c5_32, %c0_33], %31 {strides = array<i32>} : memref<8x128xf32, #tpu.memory_space<vmem>>, vector<1x128xf32>,
    %33 = vector.extract_strided_slice %2 {offsets = [6, 0], sizes = [1, 32], strides = [1, 1]} : vector<8x32xf32> to vector<1x32xf32>
    %c6 = arith.constant 6 : index
    %c0_34 = arith.constant 0 : index
    %c0_35 = arith.constant 0 : index
    %34 = vector.load %arg3[%c6, %c0_34, %c0_35] : memref<8x32x128xf32, #tpu.memory_space<vmem>>, vector<1x32x128xf32>
    %35 = vector.shape_cast %34 : vector<1x32x128xf32> to vector<32x128xf32>
    %cst_36 = arith.constant dense<0.000000e+00> : vector<1x128xf32>
    %36 = tpu.matmul %33, %35, %cst_36 {dimension_numbers = #tpu.dot_dimension_numbers<[1], [0], [0], [1], [0, 0, 1, 1], [], []>} : vector<1x32xf32>, vector<32x128xf32>, vector<1x128xf32> -> vector<1x128xf32>
    %c6_37 = arith.constant 6 : index
    %c0_38 = arith.constant 0 : index
    %37 = vector.load %arg5[%c6_37, %c0_38] : memref<8x128xf32, #tpu.memory_space<vmem>>, vector<1x128xf32>
    tpu.vector_store %arg5[%c6_37, %c0_38], %36 {strides = array<i32>} : memref<8x128xf32, #tpu.memory_space<vmem>>, vector<1x128xf32>,
    %38 = vector.extract_strided_slice %2 {offsets = [7, 0], sizes = [1, 32], strides = [1, 1]} : vector<8x32xf32> to vector<1x32xf32>
    %c7 = arith.constant 7 : index
    %c0_39 = arith.constant 0 : index
    %c0_40 = arith.constant 0 : index
    %39 = vector.load %arg3[%c7, %c0_39, %c0_40] : memref<8x32x128xf32, #tpu.memory_space<vmem>>, vector<1x32x128xf32>
    %40 = vector.shape_cast %39 : vector<1x32x128xf32> to vector<32x128xf32>
    %cst_41 = arith.constant dense<0.000000e+00> : vector<1x128xf32>
    %41 = tpu.matmul %38, %40, %cst_41 {dimension_numbers = #tpu.dot_dimension_numbers<[1], [0], [0], [1], [0, 0, 1, 1], [], []>} : vector<1x32xf32>, vector<32x128xf32>, vector<1x128xf32> -> vector<1x128xf32>
    %c7_42 = arith.constant 7 : index
    %c0_43 = arith.constant 0 : index
    %42 = vector.load %arg5[%c7_42, %c0_43] : memref<8x128xf32, #tpu.memory_space<vmem>>, vector<1x128xf32>
    tpu.vector_store %arg5[%c7_42, %c0_43], %41 {strides = array<i32>} : memref<8x128xf32, #tpu.memory_space<vmem>>, vector<1x128xf32>,
    %c0_44 = arith.constant 0 : index
    %c0_45 = arith.constant 0 : index
    %43 = vector.load %arg5[%c0_44, %c0_45] : memref<8x128xf32, #tpu.memory_space<vmem>>, vector<8x128xf32>
    %cst_46 = arith.constant dense<0.000000e+00> : vector<16x128xf32>
    %44 = tpu.matmul %0, %43, %cst_46 {dimension_numbers = #tpu.dot_dimension_numbers<[1], [0], [0], [1], [0, 0, 1, 1], [], []>} : vector<16x8xf32>, vector<8x128xf32>, vector<16x128xf32> -> vector<16x128xf32>
    %c0_47 = arith.constant 0 : index
    %c0_48 = arith.constant 0 : index
    %45 = vector.load %arg4[%c0_47, %c0_48] : memref<16x128xf32, #tpu.memory_space<vmem>>, vector<16x128xf32>
    tpu.vector_store %arg4[%c0_47, %c0_48], %44 {strides = array<i32>} : memref<16x128xf32, #tpu.memory_space<vmem>>, vector<16x128xf32>,
    return
  }
  func.func @transform_0(%arg0: i32) -> (i32, i32) {
    %c0_i32 = arith.constant 0 : i32
    %c0_i32_0 = arith.constant 0 : i32
    %c0_i32_1 = arith.constant 0 : i32
    return %c0_i32, %c0_i32_0 : i32, i32
  }
  func.func @transform_1(%arg0: i32) -> (i32, i32) {
    %c0_i32 = arith.constant 0 : i32
    %c0_i32_0 = arith.constant 0 : i32
    %c0_i32_1 = arith.constant 0 : i32
    return %c0_i32, %c0_i32_0 : i32, i32
  }
  func.func @transform_2(%arg0: i32) -> (i32, i32, i32) {
    %c0_i32 = arith.constant 0 : i32
    %c0_i32_0 = arith.constant 0 : i32
    %c0_i32_1 = arith.constant 0 : i32
    %c0_i32_2 = arith.constant 0 : i32
    return %c0_i32, %c0_i32_0, %c0_i32_1 : i32, i32, i32
  }
  func.func @transform_3(%arg0: i32) -> (i32, i32) {
    %c0_i32 = arith.constant 0 : i32
    %c0_i32_0 = arith.constant 0 : i32
    %c0_i32_1 = arith.constant 0 : i32
    return %c0_i32, %c0_i32_0 : i32, i32
  }
}

</mosaic_0001>

<llo_original>
// kernel: tpu_custom_call.1
$region0: #{tpu_custom_call.1}
  #allocation0 [shape = 'u32[]', space=smem, size = 0x4, offset = 0x4, fixed_abs, tag = 'smem constant byte address 0x4 - core index']
  #allocation1 [shape = 'u32[144,128]{1,0:T(1,128)}', space=vmem, size = 0x12000, scoped, tag = 'internal scratch']
  #allocation2 [shape = 'f32[8,128]{1,0:T(8,128)}', space=vmem, size = 0x1000, scoped, tag = 'scratch operand']
  %s0 = inlined_call_operand.vmem [shape: f32[16,8], index: 0, kind: input, shape index: {}]
  %s1 = inlined_call_operand.vmem [shape: f32[16,32], index: 1, kind: input, shape index: {}]
  %s2 = inlined_call_operand.hbm [shape: f32[8,32,128], index: 2, kind: input, shape index: {}]
  %s3 = inlined_call_operand.hbm [shape: f32[16,128], index: 3, kind: output, shape index: {}]
  %s4 = sld [smem:[#allocation0]]
  $region26: #{tpu_custom_call.1} parent=0
    _
  %s6 = ssub.s32 1, %s4
  %s7 = scalar_select 0, %s6, %s4
  $region1: #{tpu_custom_call.1} parent=0
    #allocation3 [shape = 'u8[131072]{0}', space=vmem, size = 0x20000, scoped, tag = 'input window, operand 2, single buffered']
    #allocation4 [shape = 's32[1]{0}', space=sflag, size = 0x4, scoped, tag = 'scoped memory for tpu_custom_call.1']
    #allocation5 [shape = 's32[1]{0}', space=sflag, size = 0x4, scoped, tag = 'scoped memory for tpu_custom_call.1']
    #allocation6 [shape = 'u8[8192]{0}', space=vmem, size = 0x2000, scoped, tag = 'output window, operand 0, single buffered']
    %8 = vsyncpa [#allocation4], 0
    %9 = vsyncpa [#allocation5], 0
    // Predicated region
    $region2: #{tpu_custom_call.1} parent=1 // pred_check
      _
    $region3: #{tpu_custom_call.1} parent=1 // pred_check_branch
      %11 = sbr.rel (0) target = $region5
    $region4: #{tpu_custom_call.1} parent=1 // pred_region
      _
    $region5: #{tpu_custom_call.1} parent=1 // pred_fallthru
      _
    // Predicated region
    $region6: #{tpu_custom_call.1} parent=1 // pred_check
      _
    $region7: #{tpu_custom_call.1} parent=1 // pred_check_branch
      %13 = sbr.rel (0) target = $region9
    $region8: #{tpu_custom_call.1} parent=1 // pred_region
      _
    $region9: #{tpu_custom_call.1} parent=1 // pred_fallthru
      _
    // Predicated region
    $region10: #{tpu_custom_call.1} parent=1 // pred_check
      _
    $region11: #{tpu_custom_call.1} parent=1 // pred_check_branch
      %15 = sbr.rel (0) target = $region13
    $region12: #{tpu_custom_call.1} parent=1 // pred_region
      %s17 = ssub.s32 4096, 4096
      %18 = vsyncadd [#allocation4], %s17
      %s19 = sshll.u32 [#allocation3], 4
      %s20 = int_to_ptr.vmem [resolvable:$true] %s19
      %25 = dma.hbm_to_vmem [thread:$0]  %s2, 4096, %s20, [#allocation4], 128, 128, 8
    $region13: #{tpu_custom_call.1} parent=1 // pred_fallthru
      _
    // Predicated region
    $region14: #{tpu_custom_call.1} parent=1 // pred_check
      _
    $region15: #{tpu_custom_call.1} parent=1 // pred_check_branch
      %27 = sbr.rel (0) target = $region17
    $region16: #{tpu_custom_call.1} parent=1 // pred_region
      %28 = dma.done [#allocation4], 4096
    $region17: #{tpu_custom_call.1} parent=1 // pred_fallthru
      _
    %v29 = vld [vmem:[%s0] sm:$0xff]
    %v30 = vld [vmem:[%s0 + $0x8] sm:$0xff]
    %v31 = vld [vmem:[%s1] sm:$0xff]
    %v32 = vld [vmem:[%s1 + $0x8] sm:$0xff]
    %33 = vxpose.xlu0.b32.start [1/16] %v29, 128
    %34 = vxpose.xlu0.b32.cont [2/16] %v30, 128
    %35 = vxpose.xlu0.b32.cont [3/16] 0.0, 128
    %36 = vxpose.xlu0.b32.cont [4/16] 0.0, 128
    %37 = vxpose.xlu0.b32.cont [5/16] 0.0, 128
    %38 = vxpose.xlu0.b32.cont [6/16] 0.0, 128
    %39 = vxpose.xlu0.b32.cont [7/16] 0.0, 128
    %40 = vxpose.xlu0.b32.cont [8/16] 0.0, 128
    %41 = vxpose.xlu0.b32.cont [9/16] 0.0, 128
    %42 = vxpose.xlu0.b32.cont [10/16] 0.0, 128
    %43 = vxpose.xlu0.b32.cont [11/16] 0.0, 128
    %44 = vxpose.xlu0.b32.cont [12/16] 0.0, 128
    %45 = vxpose.xlu0.b32.cont [13/16] 0.0, 128
    %46 = vxpose.xlu0.b32.cont [14/16] 0.0, 128
    %47 = vxpose.xlu0.b32.cont [15/16] 0.0, 128
    %48 = vxpose.xlu0.b32.end [16/16] 0.0, 128
    %v49 = vpop.trf.xlu0
    %v50 = vpop.trf.xlu0
    %v51 = vpop.trf.xlu0
    %v52 = vpop.trf.xlu0
    %v53 = vpop.trf.xlu0
    %v54 = vpop.trf.xlu0
    %v55 = vpop.trf.xlu0
    %v56 = vpop.trf.xlu0
    %v57 = vpop.trf.xlu0
    %v58 = vpop.trf.xlu0
    %v59 = vpop.trf.xlu0
    %v60 = vpop.trf.xlu0
    %v61 = vpop.trf.xlu0
    %v62 = vpop.trf.xlu0
    %v63 = vpop.trf.xlu0
    %v64 = vpop.trf.xlu0
    %vm65 = vcmask 130048
    %v67 = vsel %vm65, %v49, 0
    %69 = vmatprep.subr.mxu0 0.0
    %70 = vmatpush1.msra.mxu0 %v31
    %71 = vmatprep.subr.mxu0 0.0
    %72 = vmatpush1.msra.mxu0 %v32
    %73 = vmatprep.subr.mxu0 0.0
    %74 = vmatpush1.msra.mxu0 0.0
    %75 = vmatprep.subr.mxu0 0.0
    %76 = vmatpush1.msra.mxu0 0.0
    %77 = vmatprep.subr.mxu0 0.0
    %78 = vmatpush1.msra.mxu0 0.0
    %79 = vmatprep.subr.mxu0 0.0
    %80 = vmatpush1.msra.mxu0 0.0
    %81 = vmatprep.subr.mxu0 0.0
    %82 = vmatpush1.msra.mxu0 0.0
    %83 = vmatprep.subr.mxu0 0.0
    %84 = vmatpush1.msra.mxu0 0.0
    %85 = vmatprep.subr.mxu0 0.0
    %86 = vmatpush1.msra.mxu0 0.0
    %87 = vmatprep.subr.mxu0 0.0
    %88 = vmatpush1.msra.mxu0 0.0
    %89 = vmatprep.subr.mxu0 0.0
    %90 = vmatpush1.msra.mxu0 0.0
    %91 = vmatprep.subr.mxu0 0.0
    %92 = vmatpush1.msra.mxu0 0.0
    %93 = vmatprep.subr.mxu0 0.0
    %94 = vmatpush1.msra.mxu0 0.0
    %95 = vmatprep.subr.mxu0 0.0
    %96 = vmatpush1.msra.mxu0 0.0
    %97 = vmatprep.subr.mxu0 0.0
    %98 = vmatpush1.msra.mxu0 0.0
    %99 = vmatprep.subr.mxu0 0.0
    %100 = vmatpush1.msra.mxu0 0.0
    %101 = vmatprep.subr.mxu0 0.0
    %102 = vmatpush1.msra.mxu0 0.0
    %103 = vmatprep.subr.mxu0 0.0
    %104 = vmatpush1.msra.mxu0 0.0
    %105 = vmatprep.subr.mxu0 0.0
    %106 = vmatpush1.msra.mxu0 0.0
    %107 = vmatprep.subr.mxu0 0.0
    %108 = vmatpush1.msra.mxu0 0.0
    %109 = vmatprep.subr.mxu0 0.0
    %110 = vmatpush1.msra.mxu0 0.0
    %111 = vmatprep.subr.mxu0 0.0
    %112 = vmatpush1.msra.mxu0 0.0
    %113 = vmatprep.subr.mxu0 0.0
    %114 = vmatpush1.msra.mxu0 0.0
    %115 = vmatprep.subr.mxu0 0.0
    %116 = vmatpush1.msra.mxu0 0.0
    %117 = vmatprep.subr.mxu0 0.0
    %118 = vmatpush1.msra.mxu0 0.0
    %119 = vmatprep.subr.mxu0 0.0
    %120 = vmatpush1.msra.mxu0 0.0
    %121 = vmatprep.subr.mxu0 0.0
    %122 = vmatpush1.msra.mxu0 0.0
    %123 = vmatprep.subr.mxu0 0.0
    %124 = vmatpush1.msra.mxu0 0.0
    %125 = vmatprep.subr.mxu0 0.0
    %126 = vmatpush1.msra.mxu0 0.0
    %127 = vmatprep.subr.mxu0 0.0
    %128 = vmatpush1.msra.mxu0 0.0
    %129 = vmatprep.subr.mxu0 0.0
    %130 = vmatpush1.msra.mxu0 0.0
    %131 = vmatprep.subr.mxu0 0.0
    %132 = vmatpush1.msra.mxu0 0.0
    %133 = vmatprep.mubr.f32.mxu0 0.0
    %134 = vmatmul.mubr.f32.gmra.mrb[0].mxu0 %v67
    %v135 = vpop.f32.mrb[0].mxu0
    %v136 = vadd.f32 0.0, %v135
    %v137 = vpop.f32.mrb[0].mxu0
    %138 = vdwg.mxu0
    %v139 = vld [vmem:[#allocation3] sm:$0xff]
    %v140 = vld [vmem:[#allocation3 + $0x8] sm:$0xff]
    %v141 = vld [vmem:[#allocation3 + $0x10] sm:$0xff]
    %v142 = vld [vmem:[#allocation3 + $0x18] sm:$0xff]
    %vm143 = vcmask 261120
    %v145 = vsel %vm143, %v136, 0
    %147 = vmatprep.subr.mxu0 0.0
    %148 = vmatpush1.msra.mxu0 %v139
    %149 = vmatprep.subr.mxu0 0.0
    %150 = vmatpush1.msra.mxu0 %v140
    %151 = vmatprep.subr.mxu0 0.0
    %152 = vmatpush1.msra.mxu0 %v141
    %153 = vmatprep.subr.mxu0 0.0
    %154 = vmatpush1.msra.mxu0 %v142
    %155 = vmatprep.subr.mxu0 0.0
    %156 = vmatpush1.msra.mxu0 0.0
    %157 = vmatprep.subr.mxu0 0.0
    %158 = vmatpush1.msra.mxu0 0.0
    %159 = vmatprep.subr.mxu0 0.0
    %160 = vmatpush1.msra.mxu0 0.0
    %161 = vmatprep.subr.mxu0 0.0
    %162 = vmatpush1.msra.mxu0 0.0
    %163 = vmatprep.subr.mxu0 0.0
    %164 = vmatpush1.msra.mxu0 0.0
    %165 = vmatprep.subr.mxu0 0.0
    %166 = vmatpush1.msra.mxu0 0.0
    %167 = vmatprep.subr.mxu0 0.0
    %168 = vmatpush1.msra.mxu0 0.0
    %169 = vmatprep.subr.mxu0 0.0
    %170 = vmatpush1.msra.mxu0 0.0
    %171 = vmatprep.subr.mxu0 0.0
    %172 = vmatpush1.msra.mxu0 0.0
    %173 = vmatprep.subr.mxu0 0.0
    %174 = vmatpush1.msra.mxu0 0.0
    %175 = vmatprep.subr.mxu0 0.0
    %176 = vmatpush1.msra.mxu0 0.0
    %177 = vmatprep.subr.mxu0 0.0
    %178 = vmatpush1.msra.mxu0 0.0
    %179 = vmatprep.subr.mxu0 0.0
    %180 = vmatpush1.msra.mxu0 0.0
    %181 = vmatprep.subr.mxu0 0.0
    %182 = vmatpush1.msra.mxu0 0.0
    %183 = vmatprep.subr.mxu0 0.0
    %184 = vmatpush1.msra.mxu0 0.0
    %185 = vmatprep.subr.mxu0 0.0
    %186 = vmatpush1.msra.mxu0 0.0
    %187 = vmatprep.subr.mxu0 0.0
    %188 = vmatpush1.msra.mxu0 0.0
    %189 = vmatprep.subr.mxu0 0.0
    %190 = vmatpush1.msra.mxu0 0.0
    %191 = vmatprep.subr.mxu0 0.0
    %192 = vmatpush1.msra.mxu0 0.0
    %193 = vmatprep.subr.mxu0 0.0
    %194 = vmatpush1.msra.mxu0 0.0
    %195 = vmatprep.subr.mxu0 0.0
    %196 = vmatpush1.msra.mxu0 0.0
    %197 = vmatprep.subr.mxu0 0.0
    %198 = vmatpush1.msra.mxu0 0.0
    %199 = vmatprep.subr.mxu0 0.0
    %200 = vmatpush1.msra.mxu0 0.0
    %201 = vmatprep.subr.mxu0 0.0
    %202 = vmatpush1.msra.mxu0 0.0
    %203 = vmatprep.subr.mxu0 0.0
    %204 = vmatpush1.msra.mxu0 0.0
    %205 = vmatprep.subr.mxu0 0.0
    %206 = vmatpush1.msra.mxu0 0.0
    %207 = vmatprep.subr.mxu0 0.0
    %208 = vmatpush1.msra.mxu0 0.0
    %209 = vmatprep.subr.mxu0 0.0
    %210 = vmatpush1.msra.mxu0 0.0
    %211 = vmatprep.mubr.f32.mxu0 0.0
    %212 = vmatmul.mubr.f32.gmra.mrb[0].mxu0 %v145
    %v213 = vpop.f32.mrb[0].mxu0
    %v214 = vadd.f32 0.0, %v213
    %v215 = vpop.f32.mrb[0].mxu0
    %216 = vdwg.mxu0
    %217 = vst [vmem:[#allocation2] sm:$0x1] %v214
    %s218 = scalar_lea.vmem [#allocation3], 32
    %v219 = vld [vmem:[%s218] sm:$0xff]
    %v220 = vld [vmem:[%s218 + $0x8] sm:$0xff]
    %v221 = vld [vmem:[%s218 + $0x10] sm:$0xff]
    %v222 = vld [vmem:[%s218 + $0x18] sm:$0xff]
    %v223 = vrot.slane %v136, 1
    %v224 = vsel %vm143, %v223, 0
    %226 = vmatprep.subr.mxu0 0.0
    %227 = vmatpush1.msra.mxu0 %v219
    %228 = vmatprep.subr.mxu0 0.0
    %229 = vmatpush1.msra.mxu0 %v220
    %230 = vmatprep.subr.mxu0 0.0
    %231 = vmatpush1.msra.mxu0 %v221
    %232 = vmatprep.subr.mxu0 0.0
    %233 = vmatpush1.msra.mxu0 %v222
    %234 = vmatprep.subr.mxu0 0.0
    %235 = vmatpush1.msra.mxu0 0.0
    %236 = vmatprep.subr.mxu0 0.0
    %237 = vmatpush1.msra.mxu0 0.0
    %238 = vmatprep.subr.mxu0 0.0
    %239 = vmatpush1.msra.mxu0 0.0
    %240 = vmatprep.subr.mxu0 0.0
    %241 = vmatpush1.msra.mxu0 0.0
    %242 = vmatprep.subr.mxu0 0.0
    %243 = vmatpush1.msra.mxu0 0.0
    %244 = vmatprep.subr.mxu0 0.0
    %245 = vmatpush1.msra.mxu0 0.0
    %246 = vmatprep.subr.mxu0 0.0
    %247 = vmatpush1.msra.mxu0 0.0
    %248 = vmatprep.subr.mxu0 0.0
    %249 = vmatpush1.msra.mxu0 0.0
    %250 = vmatprep.subr.mxu0 0.0
    %251 = vmatpush1.msra.mxu0 0.0
    %252 = vmatprep.subr.mxu0 0.0
    %253 = vmatpush1.msra.mxu0 0.0
    %254 = vmatprep.subr.mxu0 0.0
    %255 = vmatpush1.msra.mxu0 0.0
    %256 = vmatprep.subr.mxu0 0.0
    %257 = vmatpush1.msra.mxu0 0.0
    %258 = vmatprep.subr.mxu0 0.0
    %259 = vmatpush1.msra.mxu0 0.0
    %260 = vmatprep.subr.mxu0 0.0
    %261 = vmatpush1.msra.mxu0 0.0
    %262 = vmatprep.subr.mxu0 0.0
    %263 = vmatpush1.msra.mxu0 0.0
    %264 = vmatprep.subr.mxu0 0.0
    %265 = vmatpush1.msra.mxu0 0.0
    %266 = vmatprep.subr.mxu0 0.0
    %267 = vmatpush1.msra.mxu0 0.0
    %268 = vmatprep.subr.mxu0 0.0
    %269 = vmatpush1.msra.mxu0 0.0
    %270 = vmatprep.subr.mxu0 0.0
    %271 = vmatpush1.msra.mxu0 0.0
    %272 = vmatprep.subr.mxu0 0.0
    %273 = vmatpush1.msra.mxu0 0.0
    %274 = vmatprep.subr.mxu0 0.0
    %275 = vmatpush1.msra.mxu0 0.0
    %276 = vmatprep.subr.mxu0 0.0
    %277 = vmatpush1.msra.mxu0 0.0
    %278 = vmatprep.subr.mxu0 0.0
    %279 = vmatpush1.msra.mxu0 0.0
    %280 = vmatprep.subr.mxu0 0.0
    %281 = vmatpush1.msra.mxu0 0.0
    %282 = vmatprep.subr.mxu0 0.0
    %283 = vmatpush1.msra.mxu0 0.0
    %284 = vmatprep.subr.mxu0 0.0
    %285 = vmatpush1.msra.mxu0 0.0
    %286 = vmatprep.subr.mxu0 0.0
    %287 = vmatpush1.msra.mxu0 0.0
    %288 = vmatprep.subr.mxu0 0.0
    %289 = vmatpush1.msra.mxu0 0.0
    %290 = vmatprep.mubr.f32.mxu0 0.0
    %291 = vmatmul.mubr.f32.gmra.mrb[0].mxu0 %v224
    %v292 = vpop.f32.mrb[0].mxu0
    %v293 = vadd.f32 0.0, %v292
    %v294 = vpop.f32.mrb[0].mxu0
    %295 = vdwg.mxu0
    %296 = vst [vmem:[#allocation2 + $0x1] sm:$0x1] %v293
    %s297 = scalar_lea.vmem [#allocation3], 64
    %v298 = vld [vmem:[%s297] sm:$0xff]
    %v299 = vld [vmem:[%s297 + $0x8] sm:$0xff]
    %v300 = vld [vmem:[%s297 + $0x10] sm:$0xff]
    %v301 = vld [vmem:[%s297 + $0x18] sm:$0xff]
    %v302 = vrot.slane %v136, 2
    %v303 = vsel %vm143, %v302, 0
    %305 = vmatprep.subr.mxu0 0.0
    %306 = vmatpush1.msra.mxu0 %v298
    %307 = vmatprep.subr.mxu0 0.0
    %308 = vmatpush1.msra.mxu0 %v299
    %309 = vmatprep.subr.mxu0 0.0
    %310 = vmatpush1.msra.mxu0 %v300
    %311 = vmatprep.subr.mxu0 0.0
    %312 = vmatpush1.msra.mxu0 %v301
    %313 = vmatprep.subr.mxu0 0.0
    %314 = vmatpush1.msra.mxu0 0.0
    %315 = vmatprep.subr.mxu0 0.0
    %316 = vmatpush1.msra.mxu0 0.0
    %317 = vmatprep.subr.mxu0 0.0
    %318 = vmatpush1.msra.mxu0 0.0
    %319 = vmatprep.subr.mxu0 0.0
    %320 = vmatpush1.msra.mxu0 0.0
    %321 = vmatprep.subr.mxu0 0.0
    %322 = vmatpush1.msra.mxu0 0.0
    %323 = vmatprep.subr.mxu0 0.0
    %324 = vmatpush1.msra.mxu0 0.0
    %325 = vmatprep.subr.mxu0 0.0
    %326 = vmatpush1.msra.mxu0 0.0
    %327 = vmatprep.subr.mxu0 0.0
    %328 = vmatpush1.msra.mxu0 0.0
    %329 = vmatprep.subr.mxu0 0.0
    %330 = vmatpush1.msra.mxu0 0.0
    %331 = vmatprep.subr.mxu0 0.0
    %332 = vmatpush1.msra.mxu0 0.0
    %333 = vmatprep.subr.mxu0 0.0
    %334 = vmatpush1.msra.mxu0 0.0
    %335 = vmatprep.subr.mxu0 0.0
    %336 = vmatpush1.msra.mxu0 0.0
    %337 = vmatprep.subr.mxu0 0.0
    %338 = vmatpush1.msra.mxu0 0.0
    %339 = vmatprep.subr.mxu0 0.0
    %340 = vmatpush1.msra.mxu0 0.0
    %341 = vmatprep.subr.mxu0 0.0
    %342 = vmatpush1.msra.mxu0 0.0
    %343 = vmatprep.subr.mxu0 0.0
    %344 = vmatpush1.msra.mxu0 0.0
    %345 = vmatprep.subr.mxu0 0.0
    %346 = vmatpush1.msra.mxu0 0.0
    %347 = vmatprep.subr.mxu0 0.0
    %348 = vmatpush1.msra.mxu0 0.0
    %349 = vmatprep.subr.mxu0 0.0
    %350 = vmatpush1.msra.mxu0 0.0
    %351 = vmatprep.subr.mxu0 0.0
    %352 = vmatpush1.msra.mxu0 0.0
    %353 = vmatprep.subr.mxu0 0.0
    %354 = vmatpush1.msra.mxu0 0.0
    %355 = vmatprep.subr.mxu0 0.0
    %356 = vmatpush1.msra.mxu0 0.0
    %357 = vmatprep.subr.mxu0 0.0
    %358 = vmatpush1.msra.mxu0 0.0
    %359 = vmatprep.subr.mxu0 0.0
    %360 = vmatpush1.msra.mxu0 0.0
    %361 = vmatprep.subr.mxu0 0.0
    %362 = vmatpush1.msra.mxu0 0.0
    %363 = vmatprep.subr.mxu0 0.0
    %364 = vmatpush1.msra.mxu0 0.0
    %365 = vmatprep.subr.mxu0 0.0
    %366 = vmatpush1.msra.mxu0 0.0
    %367 = vmatprep.subr.mxu0 0.0
    %368 = vmatpush1.msra.mxu0 0.0
    %369 = vmatprep.mubr.f32.mxu0 0.0
    %370 = vmatmul.mubr.f32.gmra.mrb[0].mxu0 %v303
    %v371 = vpop.f32.mrb[0].mxu0
    %v372 = vadd.f32 0.0, %v371
    %v373 = vpop.f32.mrb[0].mxu0
    %374 = vdwg.mxu0
    %375 = vst [vmem:[#allocation2 + $0x2] sm:$0x1] %v372
    %s376 = scalar_lea.vmem [#allocation3], 96
    %v377 = vld [vmem:[%s376] sm:$0xff]
    %v378 = vld [vmem:[%s376 + $0x8] sm:$0xff]
    %v379 = vld [vmem:[%s376 + $0x10] sm:$0xff]
    %v380 = vld [vmem:[%s376 + $0x18] sm:$0xff]
    %v381 = vrot.slane %v136, 3
    %v382 = vsel %vm143, %v381, 0
    %384 = vmatprep.subr.mxu0 0.0
    %385 = vmatpush1.msra.mxu0 %v377
    %386 = vmatprep.subr.mxu0 0.0
    %387 = vmatpush1.msra.mxu0 %v378
    %388 = vmatprep.subr.mxu0 0.0
    %389 = vmatpush1.msra.mxu0 %v379
    %390 = vmatprep.subr.mxu0 0.0
    %391 = vmatpush1.msra.mxu0 %v380
    %392 = vmatprep.subr.mxu0 0.0
    %393 = vmatpush1.msra.mxu0 0.0
    %394 = vmatprep.subr.mxu0 0.0
    %395 = vmatpush1.msra.mxu0 0.0
    %396 = vmatprep.subr.mxu0 0.0
    %397 = vmatpush1.msra.mxu0 0.0
    %398 = vmatprep.subr.mxu0 0.0
    %399 = vmatpush1.msra.mxu0 0.0
    %400 = vmatprep.subr.mxu0 0.0
    %401 = vmatpush1.msra.mxu0 0.0
    %402 = vmatprep.subr.mxu0 0.0
    %403 = vmatpush1.msra.mxu0 0.0
    %404 = vmatprep.subr.mxu0 0.0
    %405 = vmatpush1.msra.mxu0 0.0
    %406 = vmatprep.subr.mxu0 0.0
    %407 = vmatpush1.msra.mxu0 0.0
    %408 = vmatprep.subr.mxu0 0.0
    %409 = vmatpush1.msra.mxu0 0.0
    %410 = vmatprep.subr.mxu0 0.0
    %411 = vmatpush1.msra.mxu0 0.0
    %412 = vmatprep.subr.mxu0 0.0
    %413 = vmatpush1.msra.mxu0 0.0
    %414 = vmatprep.subr.mxu0 0.0
    %415 = vmatpush1.msra.mxu0 0.0
    %416 = vmatprep.subr.mxu0 0.0
    %417 = vmatpush1.msra.mxu0 0.0
    %418 = vmatprep.subr.mxu0 0.0
    %419 = vmatpush1.msra.mxu0 0.0
    %420 = vmatprep.subr.mxu0 0.0
    %421 = vmatpush1.msra.mxu0 0.0
    %422 = vmatprep.subr.mxu0 0.0
    %423 = vmatpush1.msra.mxu0 0.0
    %424 = vmatprep.subr.mxu0 0.0
    %425 = vmatpush1.msra.mxu0 0.0
    %426 = vmatprep.subr.mxu0 0.0
    %427 = vmatpush1.msra.mxu0 0.0
    %428 = vmatprep.subr.mxu0 0.0
    %429 = vmatpush1.msra.mxu0 0.0
    %430 = vmatprep.subr.mxu0 0.0
    %431 = vmatpush1.msra.mxu0 0.0
    %432 = vmatprep.subr.mxu0 0.0
    %433 = vmatpush1.msra.mxu0 0.0
    %434 = vmatprep.subr.mxu0 0.0
    %435 = vmatpush1.msra.mxu0 0.0
    %436 = vmatprep.subr.mxu0 0.0
    %437 = vmatpush1.msra.mxu0 0.0
    %438 = vmatprep.subr.mxu0 0.0
    %439 = vmatpush1.msra.mxu0 0.0
    %440 = vmatprep.subr.mxu0 0.0
    %441 = vmatpush1.msra.mxu0 0.0
    %442 = vmatprep.subr.mxu0 0.0
    %443 = vmatpush1.msra.mxu0 0.0
    %444 = vmatprep.subr.mxu0 0.0
    %445 = vmatpush1.msra.mxu0 0.0
    %446 = vmatprep.subr.mxu0 0.0
    %447 = vmatpush1.msra.mxu0 0.0
    %448 = vmatprep.mubr.f32.mxu0 0.0
    %449 = vmatmul.mubr.f32.gmra.mrb[0].mxu0 %v382
    %v450 = vpop.f32.mrb[0].mxu0
    %v451 = vadd.f32 0.0, %v450
    %v452 = vpop.f32.mrb[0].mxu0
    %453 = vdwg.mxu0
    %454 = vst [vmem:[#allocation2 + $0x3] sm:$0x1] %v451
    %s455 = scalar_lea.vmem [#allocation3], 128
    %v456 = vld [vmem:[%s455] sm:$0xff]
    %v457 = vld [vmem:[%s455 + $0x8] sm:$0xff]
    %v458 = vld [vmem:[%s455 + $0x10] sm:$0xff]
    %v459 = vld [vmem:[%s455 + $0x18] sm:$0xff]
    %v460 = vrot.slane %v136, 4
    %v461 = vsel %vm143, %v460, 0
    %463 = vmatprep.subr.mxu0 0.0
    %464 = vmatpush1.msra.mxu0 %v456
    %465 = vmatprep.subr.mxu0 0.0
    %466 = vmatpush1.msra.mxu0 %v457
    %467 = vmatprep.subr.mxu0 0.0
    %468 = vmatpush1.msra.mxu0 %v458
    %469 = vmatprep.subr.mxu0 0.0
    %470 = vmatpush1.msra.mxu0 %v459
    %471 = vmatprep.subr.mxu0 0.0
    %472 = vmatpush1.msra.mxu0 0.0
    %473 = vmatprep.subr.mxu0 0.0
    %474 = vmatpush1.msra.mxu0 0.0
    %475 = vmatprep.subr.mxu0 0.0
    %476 = vmatpush1.msra.mxu0 0.0
    %477 = vmatprep.subr.mxu0 0.0
    %478 = vmatpush1.msra.mxu0 0.0
    %479 = vmatprep.subr.mxu0 0.0
    %480 = vmatpush1.msra.mxu0 0.0
    %481 = vmatprep.subr.mxu0 0.0
    %482 = vmatpush1.msra.mxu0 0.0
    %483 = vmatprep.subr.mxu0 0.0
    %484 = vmatpush1.msra.mxu0 0.0
    %485 = vmatprep.subr.mxu0 0.0
    %486 = vmatpush1.msra.mxu0 0.0
    %487 = vmatprep.subr.mxu0 0.0
    %488 = vmatpush1.msra.mxu0 0.0
    %489 = vmatprep.subr.mxu0 0.0
    %490 = vmatpush1.msra.mxu0 0.0
    %491 = vmatprep.subr.mxu0 0.0
    %492 = vmatpush1.msra.mxu0 0.0
    %493 = vmatprep.subr.mxu0 0.0
    %494 = vmatpush1.msra.mxu0 0.0
    %495 = vmatprep.subr.mxu0 0.0
    %496 = vmatpush1.msra.mxu0 0.0
    %497 = vmatprep.subr.mxu0 0.0
    %498 = vmatpush1.msra.mxu0 0.0
    %499 = vmatprep.subr.mxu0 0.0
    %500 = vmatpush1.msra.mxu0 0.0
    %501 = vmatprep.subr.mxu0 0.0
    %502 = vmatpush1.msra.mxu0 0.0
    %503 = vmatprep.subr.mxu0 0.0
    %504 = vmatpush1.msra.mxu0 0.0
    %505 = vmatprep.subr.mxu0 0.0
    %506 = vmatpush1.msra.mxu0 0.0
    %507 = vmatprep.subr.mxu0 0.0
    %508 = vmatpush1.msra.mxu0 0.0
    %509 = vmatprep.subr.mxu0 0.0
    %510 = vmatpush1.msra.mxu0 0.0
    %511 = vmatprep.subr.mxu0 0.0
    %512 = vmatpush1.msra.mxu0 0.0
    %513 = vmatprep.subr.mxu0 0.0
    %514 = vmatpush1.msra.mxu0 0.0
    %515 = vmatprep.subr.mxu0 0.0
    %516 = vmatpush1.msra.mxu0 0.0
    %517 = vmatprep.subr.mxu0 0.0
    %518 = vmatpush1.msra.mxu0 0.0
    %519 = vmatprep.subr.mxu0 0.0
    %520 = vmatpush1.msra.mxu0 0.0
    %521 = vmatprep.subr.mxu0 0.0
    %522 = vmatpush1.msra.mxu0 0.0
    %523 = vmatprep.subr.mxu0 0.0
    %524 = vmatpush1.msra.mxu0 0.0
    %525 = vmatprep.subr.mxu0 0.0
    %526 = vmatpush1.msra.mxu0 0.0
    %527 = vmatprep.mubr.f32.mxu0 0.0
    %528 = vmatmul.mubr.f32.gmra.mrb[0].mxu0 %v461
    %v529 = vpop.f32.mrb[0].mxu0
    %v530 = vadd.f32 0.0, %v529
    %v531 = vpop.f32.mrb[0].mxu0
    %532 = vdwg.mxu0
    %533 = vst [vmem:[#allocation2 + $0x4] sm:$0x1] %v530
    %s534 = scalar_lea.vmem [#allocation3], 160
    %v535 = vld [vmem:[%s534] sm:$0xff]
    %v536 = vld [vmem:[%s534 + $0x8] sm:$0xff]
    %v537 = vld [vmem:[%s534 + $0x10] sm:$0xff]
    %v538 = vld [vmem:[%s534 + $0x18] sm:$0xff]
    %v539 = vrot.slane %v136, 5
    %v540 = vsel %vm143, %v539, 0
    %542 = vmatprep.subr.mxu0 0.0
    %543 = vmatpush1.msra.mxu0 %v535
    %544 = vmatprep.subr.mxu0 0.0
    %545 = vmatpush1.msra.mxu0 %v536
    %546 = vmatprep.subr.mxu0 0.0
    %547 = vmatpush1.msra.mxu0 %v537
    %548 = vmatprep.subr.mxu0 0.0
    %549 = vmatpush1.msra.mxu0 %v538
    %550 = vmatprep.subr.mxu0 0.0
    %551 = vmatpush1.msra.mxu0 0.0
    %552 = vmatprep.subr.mxu0 0.0
    %553 = vmatpush1.msra.mxu0 0.0
    %554 = vmatprep.subr.mxu0 0.0
    %555 = vmatpush1.msra.mxu0 0.0
    %556 = vmatprep.subr.mxu0 0.0
    %557 = vmatpush1.msra.mxu0 0.0
    %558 = vmatprep.subr.mxu0 0.0
    %559 = vmatpush1.msra.mxu0 0.0
    %560 = vmatprep.subr.mxu0 0.0
    %561 = vmatpush1.msra.mxu0 0.0
    %562 = vmatprep.subr.mxu0 0.0
    %563 = vmatpush1.msra.mxu0 0.0
    %564 = vmatprep.subr.mxu0 0.0
    %565 = vmatpush1.msra.mxu0 0.0
    %566 = vmatprep.subr.mxu0 0.0
    %567 = vmatpush1.msra.mxu0 0.0
    %568 = vmatprep.subr.mxu0 0.0
    %569 = vmatpush1.msra.mxu0 0.0
    %570 = vmatprep.subr.mxu0 0.0
    %571 = vmatpush1.msra.mxu0 0.0
    %572 = vmatprep.subr.mxu0 0.0
    %573 = vmatpush1.msra.mxu0 0.0
    %574 = vmatprep.subr.mxu0 0.0
    %575 = vmatpush1.msra.mxu0 0.0
    %576 = vmatprep.subr.mxu0 0.0
    %577 = vmatpush1.msra.mxu0 0.0
    %578 = vmatprep.subr.mxu0 0.0
    %579 = vmatpush1.msra.mxu0 0.0
    %580 = vmatprep.subr.mxu0 0.0
    %581 = vmatpush1.msra.mxu0 0.0
    %582 = vmatprep.subr.mxu0 0.0
    %583 = vmatpush1.msra.mxu0 0.0
    %584 = vmatprep.subr.mxu0 0.0
    %585 = vmatpush1.msra.mxu0 0.0
    %586 = vmatprep.subr.mxu0 0.0
    %587 = vmatpush1.msra.mxu0 0.0
    %588 = vmatprep.subr.mxu0 0.0
    %589 = vmatpush1.msra.mxu0 0.0
    %590 = vmatprep.subr.mxu0 0.0
    %591 = vmatpush1.msra.mxu0 0.0
    %592 = vmatprep.subr.mxu0 0.0
    %593 = vmatpush1.msra.mxu0 0.0
    %594 = vmatprep.subr.mxu0 0.0
    %595 = vmatpush1.msra.mxu0 0.0
    %596 = vmatprep.subr.mxu0 0.0
    %597 = vmatpush1.msra.mxu0 0.0
    %598 = vmatprep.subr.mxu0 0.0
    %599 = vmatpush1.msra.mxu0 0.0
    %600 = vmatprep.subr.mxu0 0.0
    %601 = vmatpush1.msra.mxu0 0.0
    %602 = vmatprep.subr.mxu0 0.0
    %603 = vmatpush1.msra.mxu0 0.0
    %604 = vmatprep.subr.mxu0 0.0
    %605 = vmatpush1.msra.mxu0 0.0
    %606 = vmatprep.mubr.f32.mxu0 0.0
    %607 = vmatmul.mubr.f32.gmra.mrb[0].mxu0 %v540
    %v608 = vpop.f32.mrb[0].mxu0
    %v609 = vadd.f32 0.0, %v608
    %v610 = vpop.f32.mrb[0].mxu0
    %611 = vdwg.mxu0
    %612 = vst [vmem:[#allocation2 + $0x5] sm:$0x1] %v609
    %s613 = scalar_lea.vmem [#allocation3], 192
    %v614 = vld [vmem:[%s613] sm:$0xff]
    %v615 = vld [vmem:[%s613 + $0x8] sm:$0xff]
    %v616 = vld [vmem:[%s613 + $0x10] sm:$0xff]
    %v617 = vld [vmem:[%s613 + $0x18] sm:$0xff]
    %v618 = vrot.slane %v136, 6
    %v619 = vsel %vm143, %v618, 0
    %621 = vmatprep.subr.mxu0 0.0
    %622 = vmatpush1.msra.mxu0 %v614
    %623 = vmatprep.subr.mxu0 0.0
    %624 = vmatpush1.msra.mxu0 %v615
    %625 = vmatprep.subr.mxu0 0.0
    %626 = vmatpush1.msra.mxu0 %v616
    %627 = vmatprep.subr.mxu0 0.0
    %628 = vmatpush1.msra.mxu0 %v617
    %629 = vmatprep.subr.mxu0 0.0
    %630 = vmatpush1.msra.mxu0 0.0
    %631 = vmatprep.subr.mxu0 0.0
    %632 = vmatpush1.msra.mxu0 0.0
    %633 = vmatprep.subr.mxu0 0.0
    %634 = vmatpush1.msra.mxu0 0.0
    %635 = vmatprep.subr.mxu0 0.0
    %636 = vmatpush1.msra.mxu0 0.0
    %637 = vmatprep.subr.mxu0 0.0
    %638 = vmatpush1.msra.mxu0 0.0
    %639 = vmatprep.subr.mxu0 0.0
    %640 = vmatpush1.msra.mxu0 0.0
    %641 = vmatprep.subr.mxu0 0.0
    %642 = vmatpush1.msra.mxu0 0.0
    %643 = vmatprep.subr.mxu0 0.0
    %644 = vmatpush1.msra.mxu0 0.0
    %645 = vmatprep.subr.mxu0 0.0
    %646 = vmatpush1.msra.mxu0 0.0
    %647 = vmatprep.subr.mxu0 0.0
    %648 = vmatpush1.msra.mxu0 0.0
    %649 = vmatprep.subr.mxu0 0.0
    %650 = vmatpush1.msra.mxu0 0.0
    %651 = vmatprep.subr.mxu0 0.0
    %652 = vmatpush1.msra.mxu0 0.0
    %653 = vmatprep.subr.mxu0 0.0
    %654 = vmatpush1.msra.mxu0 0.0
    %655 = vmatprep.subr.mxu0 0.0
    %656 = vmatpush1.msra.mxu0 0.0
    %657 = vmatprep.subr.mxu0 0.0
    %658 = vmatpush1.msra.mxu0 0.0
    %659 = vmatprep.subr.mxu0 0.0
    %660 = vmatpush1.msra.mxu0 0.0
    %661 = vmatprep.subr.mxu0 0.0
    %662 = vmatpush1.msra.mxu0 0.0
    %663 = vmatprep.subr.mxu0 0.0
    %664 = vmatpush1.msra.mxu0 0.0
    %665 = vmatprep.subr.mxu0 0.0
    %666 = vmatpush1.msra.mxu0 0.0
    %667 = vmatprep.subr.mxu0 0.0
    %668 = vmatpush1.msra.mxu0 0.0
    %669 = vmatprep.subr.mxu0 0.0
    %670 = vmatpush1.msra.mxu0 0.0
    %671 = vmatprep.subr.mxu0 0.0
    %672 = vmatpush1.msra.mxu0 0.0
    %673 = vmatprep.subr.mxu0 0.0
    %674 = vmatpush1.msra.mxu0 0.0
    %675 = vmatprep.subr.mxu0 0.0
    %676 = vmatpush1.msra.mxu0 0.0
    %677 = vmatprep.subr.mxu0 0.0
    %678 = vmatpush1.msra.mxu0 0.0
    %679 = vmatprep.subr.mxu0 0.0
    %680 = vmatpush1.msra.mxu0 0.0
    %681 = vmatprep.subr.mxu0 0.0
    %682 = vmatpush1.msra.mxu0 0.0
    %683 = vmatprep.subr.mxu0 0.0
    %684 = vmatpush1.msra.mxu0 0.0
    %685 = vmatprep.mubr.f32.mxu0 0.0
    %686 = vmatmul.mubr.f32.gmra.mrb[0].mxu0 %v619
    %v687 = vpop.f32.mrb[0].mxu0
    %v688 = vadd.f32 0.0, %v687
    %v689 = vpop.f32.mrb[0].mxu0
    %690 = vdwg.mxu0
    %691 = vst [vmem:[#allocation2 + $0x6] sm:$0x1] %v688
    %s692 = scalar_lea.vmem [#allocation3], 224
    %v693 = vld [vmem:[%s692] sm:$0xff]
    %v694 = vld [vmem:[%s692 + $0x8] sm:$0xff]
    %v695 = vld [vmem:[%s692 + $0x10] sm:$0xff]
    %v696 = vld [vmem:[%s692 + $0x18] sm:$0xff]
    %v697 = vrot.slane %v136, 7
    %v698 = vsel %vm143, %v697, 0
    %700 = vmatprep.subr.mxu0 0.0
    %701 = vmatpush1.msra.mxu0 %v693
    %702 = vmatprep.subr.mxu0 0.0
    %703 = vmatpush1.msra.mxu0 %v694
    %704 = vmatprep.subr.mxu0 0.0
    %705 = vmatpush1.msra.mxu0 %v695
    %706 = vmatprep.subr.mxu0 0.0
    %707 = vmatpush1.msra.mxu0 %v696
    %708 = vmatprep.subr.mxu0 0.0
    %709 = vmatpush1.msra.mxu0 0.0
    %710 = vmatprep.subr.mxu0 0.0
    %711 = vmatpush1.msra.mxu0 0.0
    %712 = vmatprep.subr.mxu0 0.0
    %713 = vmatpush1.msra.mxu0 0.0
    %714 = vmatprep.subr.mxu0 0.0
    %715 = vmatpush1.msra.mxu0 0.0
    %716 = vmatprep.subr.mxu0 0.0
    %717 = vmatpush1.msra.mxu0 0.0
    %718 = vmatprep.subr.mxu0 0.0
    %719 = vmatpush1.msra.mxu0 0.0
    %720 = vmatprep.subr.mxu0 0.0
    %721 = vmatpush1.msra.mxu0 0.0
    %722 = vmatprep.subr.mxu0 0.0
    %723 = vmatpush1.msra.mxu0 0.0
    %724 = vmatprep.subr.mxu0 0.0
    %725 = vmatpush1.msra.mxu0 0.0
    %726 = vmatprep.subr.mxu0 0.0
    %727 = vmatpush1.msra.mxu0 0.0
    %728 = vmatprep.subr.mxu0 0.0
    %729 = vmatpush1.msra.mxu0 0.0
    %730 = vmatprep.subr.mxu0 0.0
    %731 = vmatpush1.msra.mxu0 0.0
    %732 = vmatprep.subr.mxu0 0.0
    %733 = vmatpush1.msra.mxu0 0.0
    %734 = vmatprep.subr.mxu0 0.0
    %735 = vmatpush1.msra.mxu0 0.0
    %736 = vmatprep.subr.mxu0 0.0
    %737 = vmatpush1.msra.mxu0 0.0
    %738 = vmatprep.subr.mxu0 0.0
    %739 = vmatpush1.msra.mxu0 0.0
    %740 = vmatprep.subr.mxu0 0.0
    %741 = vmatpush1.msra.mxu0 0.0
    %742 = vmatprep.subr.mxu0 0.0
    %743 = vmatpush1.msra.mxu0 0.0
    %744 = vmatprep.subr.mxu0 0.0
    %745 = vmatpush1.msra.mxu0 0.0
    %746 = vmatprep.subr.mxu0 0.0
    %747 = vmatpush1.msra.mxu0 0.0
    %748 = vmatprep.subr.mxu0 0.0
    %749 = vmatpush1.msra.mxu0 0.0
    %750 = vmatprep.subr.mxu0 0.0
    %751 = vmatpush1.msra.mxu0 0.0
    %752 = vmatprep.subr.mxu0 0.0
    %753 = vmatpush1.msra.mxu0 0.0
    %754 = vmatprep.subr.mxu0 0.0
    %755 = vmatpush1.msra.mxu0 0.0
    %756 = vmatprep.subr.mxu0 0.0
    %757 = vmatpush1.msra.mxu0 0.0
    %758 = vmatprep.subr.mxu0 0.0
    %759 = vmatpush1.msra.mxu0 0.0
    %760 = vmatprep.subr.mxu0 0.0
    %761 = vmatpush1.msra.mxu0 0.0
    %762 = vmatprep.subr.mxu0 0.0
    %763 = vmatpush1.msra.mxu0 0.0
    %764 = vmatprep.mubr.f32.mxu0 0.0
    %765 = vmatmul.mubr.f32.gmra.mrb[0].mxu0 %v698
    %v766 = vpop.f32.mrb[0].mxu0
    %v767 = vadd.f32 0.0, %v766
    %v768 = vpop.f32.mrb[0].mxu0
    %769 = vdwg.mxu0
    %770 = vst [vmem:[#allocation2 + $0x7] sm:$0x1] %v767
    %v771 = vld [vmem:[#allocation2] sm:$0xff]
    %vm772 = vcmask 64512
    %v774 = vsel %vm772, %v29, 0
    %v777 = vsel %vm772, %v30, 0
    %779 = vmatprep.subr.mxu0 0.0
    %780 = vmatpush1.msra.mxu0 %v771
    %781 = vmatprep.subr.mxu0 0.0
    %782 = vmatpush1.msra.mxu0 0.0
    %783 = vmatprep.subr.mxu0 0.0
    %784 = vmatpush1.msra.mxu0 0.0
    %785 = vmatprep.subr.mxu0 0.0
    %786 = vmatpush1.msra.mxu0 0.0
    %787 = vmatprep.subr.mxu0 0.0
    %788 = vmatpush1.msra.mxu0 0.0
    %789 = vmatprep.subr.mxu0 0.0
    %790 = vmatpush1.msra.mxu0 0.0
    %791 = vmatprep.subr.mxu0 0.0
    %792 = vmatpush1.msra.mxu0 0.0
    %793 = vmatprep.subr.mxu0 0.0
    %794 = vmatpush1.msra.mxu0 0.0
    %795 = vmatprep.subr.mxu0 0.0
    %796 = vmatpush1.msra.mxu0 0.0
    %797 = vmatprep.subr.mxu0 0.0
    %798 = vmatpush1.msra.mxu0 0.0
    %799 = vmatprep.subr.mxu0 0.0
    %800 = vmatpush1.msra.mxu0 0.0
    %801 = vmatprep.subr.mxu0 0.0
    %802 = vmatpush1.msra.mxu0 0.0
    %803 = vmatprep.subr.mxu0 0.0
    %804 = vmatpush1.msra.mxu0 0.0
    %805 = vmatprep.subr.mxu0 0.0
    %806 = vmatpush1.msra.mxu0 0.0
    %807 = vmatprep.subr.mxu0 0.0
    %808 = vmatpush1.msra.mxu0 0.0
    %809 = vmatprep.subr.mxu0 0.0
    %810 = vmatpush1.msra.mxu0 0.0
    %811 = vmatprep.subr.mxu0 0.0
    %812 = vmatpush1.msra.mxu0 0.0
    %813 = vmatprep.subr.mxu0 0.0
    %814 = vmatpush1.msra.mxu0 0.0
    %815 = vmatprep.subr.mxu0 0.0
    %816 = vmatpush1.msra.mxu0 0.0
    %817 = vmatprep.subr.mxu0 0.0
    %818 = vmatpush1.msra.mxu0 0.0
    %819 = vmatprep.subr.mxu0 0.0
    %820 = vmatpush1.msra.mxu0 0.0
    %821 = vmatprep.subr.mxu0 0.0
    %822 = vmatpush1.msra.mxu0 0.0
    %823 = vmatprep.subr.mxu0 0.0
    %824 = vmatpush1.msra.mxu0 0.0
    %825 = vmatprep.subr.mxu0 0.0
    %826 = vmatpush1.msra.mxu0 0.0
    %827 = vmatprep.subr.mxu0 0.0
    %828 = vmatpush1.msra.mxu0 0.0
    %829 = vmatprep.subr.mxu0 0.0
    %830 = vmatpush1.msra.mxu0 0.0
    %831 = vmatprep.subr.mxu0 0.0
    %832 = vmatpush1.msra.mxu0 0.0
    %833 = vmatprep.subr.mxu0 0.0
    %834 = vmatpush1.msra.mxu0 0.0
    %835 = vmatprep.subr.mxu0 0.0
    %836 = vmatpush1.msra.mxu0 0.0
    %837 = vmatprep.subr.mxu0 0.0
    %838 = vmatpush1.msra.mxu0 0.0
    %839 = vmatprep.subr.mxu0 0.0
    %840 = vmatpush1.msra.mxu0 0.0
    %841 = vmatprep.subr.mxu0 0.0
    %842 = vmatpush1.msra.mxu0 0.0
    %843 = vmatprep.mubr.f32.mxu0 0.0
    %844 = vmatmul.mubr.f32.gmra.mrb[0].mxu0 %v774
    %v845 = vpop.f32.mrb[0].mxu0
    %v846 = vadd.f32 0.0, %v845
    %v847 = vpop.f32.mrb[0].mxu0
    %848 = vmatprep.mubr.f32.mxu0 0.0
    %849 = vmatmul.mubr.f32.gmra.mrb[0].mxu0 %v777
    %v850 = vpop.f32.mrb[0].mxu0
    %v851 = vadd.f32 0.0, %v850
    %v852 = vpop.f32.mrb[0].mxu0
    %853 = vdwg.mxu0
    %854 = vst [vmem:[#allocation6] sm:$0xff] %v846
    %855 = vst [vmem:[#allocation6 + $0x8] sm:$0xff] %v851
    // Predicated region
    $region18: #{tpu_custom_call.1} parent=1 // pred_check
      _
    $region19: #{tpu_custom_call.1} parent=1 // pred_check_branch
      %857 = sbr.rel (0) target = $region21
    $region20: #{tpu_custom_call.1} parent=1 // pred_region
      %s859 = ssub.s32 256, 256
      %860 = vsyncadd [#allocation5], %s859
      %s861 = sshll.u32 [#allocation6], 4
      %s862 = int_to_ptr.vmem [resolvable:$true] %s861
      %867 = dma.vmem_to_hbm [thread:$0]  %s862, 256, %s3, [#allocation5], 128, 128, 8
    $region21: #{tpu_custom_call.1} parent=1 // pred_fallthru
      _
    // Predicated region
    $region22: #{tpu_custom_call.1} parent=1 // pred_check
      _
    $region23: #{tpu_custom_call.1} parent=1 // pred_check_branch
      %869 = sbr.rel (0) target = $region25
    $region24: #{tpu_custom_call.1} parent=1 // pred_region
      %870 = dma.done [#allocation5], 256
    $region25: #{tpu_custom_call.1} parent=1 // pred_fallthru
      _
    %871 = vsyncpa [#allocation4], 1
    %872 = vsyncpa [#allocation5], 1

</llo_original>
